<compile_context>
chip_gen: v6e
topology: v6e:2x2x1
jax: 0.10.0
libtpu: 0.0.40
codegen_flags: <defaults>
</compile_context>

<pallas_src>
import jax
import jax.numpy as jnp
from jax.experimental import pallas as pl
from jax.experimental.pallas import tpu as pltpu


# ---------------------------------------------------------------------------
# helpers
# ---------------------------------------------------------------------------
def _vmem_capacity_bytes():
    try:
        return int(pltpu.get_tpu_info().vmem_capacity_bytes)
    except Exception:
        return 64 << 20  # conservative: v7x per-TensorCore VMEM


def _round_down(x, m):
    return max(m, (int(x) // m) * m)


# ---------------------------------------------------------------------------
# Path A: full-sublane (rows, 128) pixel layout, scalar weights in SMEM.
#   x4:  (B, cin,  R, 128)   R = P // 128
#   out: (B, cout, R, 128)
# ---------------------------------------------------------------------------
def _cpa_rows_kernel(w_ref, shift_ref, x_ref, o_ref):
    # w_ref: SMEM (cout*cin,), shift_ref: SMEM (cout,)
    # x_ref: (cin, tr, 128), o_ref: (cout, tr, 128)
    cin = x_ref.shape[0]
    cout = o_ref.shape[0]
    for co in range(cout):
        acc = w_ref[co * cin] * x_ref[0].astype(jnp.float32)
        for ci in range(1, cin):
            acc = acc + w_ref[co * cin + ci] * x_ref[ci].astype(jnp.float32)
        o_ref[co] = (acc + shift_ref[co]).astype(o_ref.dtype)


def _cpa_rows_kernel_res(w_ref, shift_ref, x_ref, sc_ref, o_ref):
    cin = x_ref.shape[0]
    cout = o_ref.shape[0]
    for co in range(cout):
        acc = w_ref[co * cin] * x_ref[0].astype(jnp.float32)
        for ci in range(1, cin):
            acc = acc + w_ref[co * cin + ci] * x_ref[ci].astype(jnp.float32)
        acc = acc + shift_ref[co] + sc_ref[co].astype(jnp.float32)
        o_ref[co] = acc.astype(o_ref.dtype)


def _fused_rows(x4, w_flat, shift_flat, sc4, out_dtype):
    B, cin, R, L = x4.shape  # L == 128
    cout = int(shift_flat.shape[0])
    res = sc4 is not None

    vmem_cap = _vmem_capacity_bytes()
    # per-step working-set budget (double-buffered by the BlockSpec pipeline):
    # ~10 MiB on v7x (64 MiB VMEM), ~21 MiB on v5e/v6e (128 MiB VMEM).
    budget = min(vmem_cap // 6, 24 << 20)

    bytes_per_row = L * (cin * jnp.dtype(x4.dtype).itemsize
                         + cout * jnp.dtype(out_dtype).itemsize
                         + (cout * jnp.dtype(sc4.dtype).itemsize if res else 0))
    tile_r = max(1, budget // (2 * bytes_per_row))
    if tile_r >= R:
        tile_r = R
    else:
        tile_r = _round_down(tile_r, 8)  # keep (8,128) tiling / unmasked vst
    # v7x has 2 TensorCores: keep >= 2 blocks on a parallel axis when B == 1.
    if B == 1 and tile_r >= R and R >= 16:
        tile_r = _round_down(pl.cdiv(R, 2), 8)

    grid = (B, pl.cdiv(R, tile_r))

    smem_spec = pl.BlockSpec(memory_space=pltpu.MemorySpace.SMEM)
    x_spec = pl.BlockSpec((None, cin, tile_r, L), lambda b, r: (b, 0, r, 0))
    o_spec = pl.BlockSpec((None, cout, tile_r, L), lambda b, r: (b, 0, r, 0))

    per_step = tile_r * bytes_per_row
    vmem_need = 2 * per_step + (1 << 20)
    cp = {"dimension_semantics": ("parallel", "parallel")}
    if vmem_need > (16 << 20):
        cp["vmem_limit_bytes"] = int(min(vmem_need, vmem_cap // 2))
    compiler_params = pltpu.CompilerParams(**cp)

    out_shape = jax.ShapeDtypeStruct((B, cout, R, L), out_dtype)

    if res:
        return pl.pallas_call(
            _cpa_rows_kernel_res,
            out_shape=out_shape,
            grid_spec=pltpu.PrefetchScalarGridSpec(
                num_scalar_prefetch=0,
                grid=grid,
                in_specs=[smem_spec, smem_spec, x_spec, o_spec],
                out_specs=o_spec,
            ),
            compiler_params=compiler_params,
        )(w_flat, shift_flat, x4, sc4)

    return pl.pallas_call(
        _cpa_rows_kernel,
        out_shape=out_shape,
        grid_spec=pltpu.PrefetchScalarGridSpec(
            num_scalar_prefetch=0,
            grid=grid,
            in_specs=[smem_spec, smem_spec, x_spec],
            out_specs=o_spec,
        ),
        compiler_params=compiler_params,
    )(w_flat, shift_flat, x4)


# ---------------------------------------------------------------------------
# Path B: channel-major fallback (deep channel counts or P % 128 != 0).
#   x3: (B, cin, P), out: (B, cout, P)
# ---------------------------------------------------------------------------
def _project(w, x):
    """(cout, cin) @ (cin, TP) -> (cout, TP) f32."""
    cout, cin = w.shape
    # v6e/v7x MXUs are 256 deep; only engage them when both the contraction
    # depth and the number of output rows justify the systolic array + drain.
    if cin >= 128 and cout >= 64:
        return jnp.dot(w, x, preferred_element_type=jnp.float32)
    wf = w.astype(jnp.float32)  # casts hoisted out of the loop
    xf = x.astype(jnp.float32)
    y = wf[:, 0:1] * xf[0:1, :]
    for c in range(1, cin):
        y = y + wf[:, c:c + 1] * xf[c:c + 1, :]
    return y


def _cpa_cmajor_kernel(x_ref, w_ref, shift_ref, o_ref):
    y = _project(w_ref[...], x_ref[...]) + shift_ref[...]
    o_ref[...] = y.astype(o_ref.dtype)


def _cpa_cmajor_kernel_res(x_ref, sc_ref, w_ref, shift_ref, o_ref):
    y = _project(w_ref[...], x_ref[...]) + shift_ref[...]
    o_ref[...] = (y + sc_ref[...].astype(jnp.float32)).astype(o_ref.dtype)


def _fused_cmajor(x3, w_f, shift_f, sc3, out_dtype):
    B, cin, P = x3.shape
    cout = w_f.shape[0]
    res = sc3 is not None

    vmem_cap = _vmem_capacity_bytes()
    budget = min(vmem_cap // 6, 24 << 20)

    bytes_per_px = (cin * jnp.dtype(x3.dtype).itemsize
                    + cout * jnp.dtype(out_dtype).itemsize
                    + (cout * jnp.dtype(sc3.dtype).itemsize if res else 0))
    tile_p = _round_down(budget // (2 * bytes_per_px), 128)
    if tile_p >= P:
        tile_p = P  # full extent (no (8,128) constraint when equal to array dim)
    grid = (B, pl.cdiv(P, tile_p))

    x_spec = pl.BlockSpec((None, cin, tile_p), lambda b, j: (b, 0, j))
    r_spec = pl.BlockSpec((None, cout, tile_p), lambda b, j: (b, 0, j))
    w_spec = pl.BlockSpec((cout, cin), lambda b, j: (0, 0))
    s_spec = pl.BlockSpec((cout, 1), lambda b, j: (0, 0))
    o_spec = pl.BlockSpec((None, cout, tile_p), lambda b, j: (b, 0, j))

    per_step = tile_p * bytes_per_px
    resident = cout * cin * 4 + cout * 4
    vmem_need = 2 * per_step + 2 * resident + (1 << 20)
    cp = {"dimension_semantics": ("parallel", "parallel")}
    if vmem_need > (16 << 20):
        cp["vmem_limit_bytes"] = int(min(vmem_need, vmem_cap // 2))
    compiler_params = pltpu.CompilerParams(**cp)

    out_shape = jax.ShapeDtypeStruct((B, cout, P), out_dtype)

    if res:
        return pl.pallas_call(
            _cpa_cmajor_kernel_res,
            out_shape=out_shape,
            grid_spec=pltpu.PrefetchScalarGridSpec(
                num_scalar_prefetch=0,
                grid=grid,
                in_specs=[x_spec, r_spec, w_spec, s_spec],
                out_specs=o_spec,
            ),
            compiler_params=compiler_params,
        )(x3, sc3, w_f, shift_f)

    return pl.pallas_call(
        _cpa_cmajor_kernel,
        out_shape=out_shape,
        grid_spec=pltpu.PrefetchScalarGridSpec(
            num_scalar_prefetch=0,
            grid=grid,
            in_specs=[x_spec, w_spec, s_spec],
            out_specs=o_spec,
        ),
        compiler_params=compiler_params,
    )(x3, w_f, shift_f)


# ---------------------------------------------------------------------------
# CPA module (parameters in plain JAX; forward calls the fused Pallas kernel)
# ---------------------------------------------------------------------------
class CPA:
    def __init__(self, in_dim, dim, stride=1, same=False, sc_x=True, up=False,
                 key=jax.random.PRNGKey(42), eps=1e-5):
        self.in_dim = in_dim
        self.dim = dim
        self.stride = stride
        self.same = same
        self.sc_x = sc_x
        self.up = up
        self.eps = eps

        k0, k1, k2, k3, k4, k5 = jax.random.split(key, 6)
        # nn.Linear(in_dim, dim): weight (dim, in_dim), bias (dim,)
        bound = 1.0 / (in_dim ** 0.5)
        self.w = jax.random.uniform(k0, (dim, in_dim), jnp.float32, -bound, bound)
        self.b = jax.random.uniform(k1, (dim,), jnp.float32, -bound, bound)
        # BatchNorm2d(dim) -- inference mode with running statistics.
        # TODO(synk): BatchNorm2d training-mode batch statistics / running-stat
        # updates are not implemented (inference folding only).
        self.gamma = 1.0 + 0.1 * jax.random.normal(k2, (dim,), jnp.float32)
        self.beta = 0.1 * jax.random.normal(k3, (dim,), jnp.float32)
        self.running_mean = 0.1 * jax.random.normal(k4, (dim,), jnp.float32)
        self.running_var = 1.0 + 0.1 * jax.random.uniform(k5, (dim,), jnp.float32)

    def _folded_params(self):
        bn_scale = self.gamma / jnp.sqrt(self.running_var + self.eps)
        bn_shift = self.beta - self.running_mean * bn_scale
        w_f = self.w * bn_scale[:, None]                 # (dim, in_dim)
        shift_f = bn_shift + self.b * bn_scale           # (dim,)
        return w_f, shift_f

    def __call__(self, x, sc_x):
        # x, sc_x: NCHW float32
        b, c, w, h = x.shape
        assert c == self.in_dim
        p = w * h

        w_f, shift_f = self._folded_params()
        add_res = self.sc_x and (sc_x.shape == (b, self.dim, w, h))

        # Route: full-sublane (rows, 128) pixel layout whenever the pixel count
        # is lane-aligned and the channel fan-in/out is small enough for the
        # unrolled scalar-FMA projection; otherwise the channel-major path.
        if p % 128 == 0 and self.in_dim * self.dim <= 512:
            r = p // 128
            x4 = x.reshape(b, c, r, 128)
            sc4 = sc_x.reshape(b, self.dim, r, 128) if add_res else None
            out4 = _fused_rows(x4, w_f.reshape(-1), shift_f, sc4, x.dtype)
            out = out4.reshape(b, self.dim, w, h)
        else:
            x3 = x.reshape(b, c, p)
            sc3 = sc_x.reshape(b, self.dim, p) if add_res else None
            out3 = _fused_cmajor(x3, w_f, shift_f.reshape(self.dim, 1), sc3, x.dtype)
            out = out3.reshape(b, self.dim, w, h)

        if self.stride == 2 or self.same:
            if self.same:
                return out
            _, _, hh, ww = out.shape
            if hh % 2 == 0:
                if self.up and self.stride == 2:
                    # nn.Upsample(scale_factor=2), nearest
                    out = jnp.repeat(jnp.repeat(out, 2, axis=2), 2, axis=3)
                else:
                    # nn.AvgPool2d(2)
                    # TODO(synk): fuse the 2x2 avg-pool into the kernel's store
                    # stage to avoid the extra HBM round trip at stride==2.
                    bo, co, ho, wo = out.shape
                    out = out.reshape(bo, co, ho // 2, 2, wo // 2, 2).mean(axis=(3, 5))
            else:
                # TODO(synk): odd-size F.avg_pool2d(k=3, s=2, p=1) branch left
                # unimplemented (not exercised at stride=1).
                raise NotImplementedError
        return out

    # pure-JAX reference for correctness checking
    def reference(self, x, sc_x):
        out = jnp.einsum('bcwh,dc->bdwh', x, self.w,
                         precision=jax.lax.Precision.HIGHEST)
        out = out + self.b[None, :, None, None]
        scale = self.gamma / jnp.sqrt(self.running_var + self.eps)
        shift = self.beta - self.running_mean * scale
        out = out * scale[None, :, None, None] + shift[None, :, None, None]
        if self.sc_x and out.shape == sc_x.shape:
            out = sc_x + out
        if self.stride == 2 or self.same:
            if self.same:
                return out
            bo, co, ho, wo = out.shape
            out = out.reshape(bo, co, ho // 2, 2, wo // 2, 2).mean(axis=(3, 5))
        return out


# ---------------------------------------------------------------------------
if __name__ == "__main__":
    key = jax.random.PRNGKey(0)
    kx, ks, kp = jax.random.split(key, 3)

    # small shapes: batch=2, channels=4, spatial 16x16; in_dim == dim so the
    # residual (sc_x + out) branch is exercised; stride=1/same=False (no pool).
    B, C, W, H = 2, 4, 16, 16
    x = jax.random.normal(kx, (B, C, W, H), jnp.float32)
    sc = jax.random.normal(ks, (B, C, W, H), jnp.float32)

    cpa = CPA(in_dim=C, dim=C, stride=1, same=False, sc_x=True, up=False, key=kp)

    out = jax.block_until_ready(cpa(x, sc))

    ref = cpa.reference(x, sc)
    assert out.shape == (B, C, W, H), out.shape
    err = float(jnp.max(jnp.abs(out - ref)))
    assert err < 1e-4, err

    print("KERNEL_OK")
</pallas_src>

<mosaic_0001>
module attributes {stable_mosaic.version = 11 : i64} {
  func.func @_cpa_rows_kernel_res(%arg0: i32, %arg1: i32, %arg2: memref<16xf32, #tpu.memory_space<smem>>, %arg3: memref<4xf32, #tpu.memory_space<smem>>, %arg4: memref<1x4x2x128xf32, #tpu.memory_space<vmem>>, %arg5: memref<1x4x2x128xf32, #tpu.memory_space<vmem>>, %arg6: memref<1x4x2x128xf32, #tpu.memory_space<vmem>>) attributes {dimension_semantics = [#tpu.dimension_semantics<parallel>, #tpu.dimension_semantics<parallel>], iteration_bounds = array<i64: 2, 1>, scalar_prefetch = 0 : i64, scratch_operands = 0 : i64, tpu.core_type = #tpu.core_type<tc>, window_params = [{transform_indices = @transform_0, window_bounds = array<i64: 16>}, {transform_indices = @transform_1, window_bounds = array<i64: 4>}, {transform_indices = @transform_2, window_bounds = array<i64: 1, 4, 2, 128>}, {transform_indices = @transform_3, window_bounds = array<i64: 1, 4, 2, 128>}, {transform_indices = @transform_4, window_bounds = array<i64: 1, 4, 2, 128>}]} {
    %c0 = arith.constant 0 : index
    %0 = memref.load %arg2[%c0] : memref<16xf32, #tpu.memory_space<smem>>
    %c0_0 = arith.constant 0 : index
    %c0_1 = arith.constant 0 : index
    %c0_2 = arith.constant 0 : index
    %c0_3 = arith.constant 0 : index
    %1 = vector.load %arg4[%c0_0, %c0_1, %c0_2, %c0_3] : memref<1x4x2x128xf32, #tpu.memory_space<vmem>>, vector<1x1x2x128xf32>
    %2 = vector.shape_cast %1 : vector<1x1x2x128xf32> to vector<2x128xf32>
    %3 = vector.broadcast %0 : f32 to vector<2x128xf32>
    %4 = arith.mulf %3, %2 : vector<2x128xf32>
    %c1 = arith.constant 1 : index
    %5 = memref.load %arg2[%c1] : memref<16xf32, #tpu.memory_space<smem>>
    %c0_4 = arith.constant 0 : index
    %c1_5 = arith.constant 1 : index
    %c0_6 = arith.constant 0 : index
    %c0_7 = arith.constant 0 : index
    %6 = vector.load %arg4[%c0_4, %c1_5, %c0_6, %c0_7] : memref<1x4x2x128xf32, #tpu.memory_space<vmem>>, vector<1x1x2x128xf32>
    %7 = vector.shape_cast %6 : vector<1x1x2x128xf32> to vector<2x128xf32>
    %8 = vector.broadcast %5 : f32 to vector<2x128xf32>
    %9 = arith.mulf %8, %7 : vector<2x128xf32>
    %10 = arith.addf %4, %9 : vector<2x128xf32>
    %c2 = arith.constant 2 : index
    %11 = memref.load %arg2[%c2] : memref<16xf32, #tpu.memory_space<smem>>
    %c0_8 = arith.constant 0 : index
    %c2_9 = arith.constant 2 : index
    %c0_10 = arith.constant 0 : index
    %c0_11 = arith.constant 0 : index
    %12 = vector.load %arg4[%c0_8, %c2_9, %c0_10, %c0_11] : memref<1x4x2x128xf32, #tpu.memory_space<vmem>>, vector<1x1x2x128xf32>
    %13 = vector.shape_cast %12 : vector<1x1x2x128xf32> to vector<2x128xf32>
    %14 = vector.broadcast %11 : f32 to vector<2x128xf32>
    %15 = arith.mulf %14, %13 : vector<2x128xf32>
    %16 = arith.addf %10, %15 : vector<2x128xf32>
    %c3 = arith.constant 3 : index
    %17 = memref.load %arg2[%c3] : memref<16xf32, #tpu.memory_space<smem>>
    %c0_12 = arith.constant 0 : index
    %c3_13 = arith.constant 3 : index
    %c0_14 = arith.constant 0 : index
    %c0_15 = arith.constant 0 : index
    %18 = vector.load %arg4[%c0_12, %c3_13, %c0_14, %c0_15] : memref<1x4x2x128xf32, #tpu.memory_space<vmem>>, vector<1x1x2x128xf32>
    %19 = vector.shape_cast %18 : vector<1x1x2x128xf32> to vector<2x128xf32>
    %20 = vector.broadcast %17 : f32 to vector<2x128xf32>
    %21 = arith.mulf %20, %19 : vector<2x128xf32>
    %22 = arith.addf %16, %21 : vector<2x128xf32>
    %c0_16 = arith.constant 0 : index
    %23 = memref.load %arg3[%c0_16] : memref<4xf32, #tpu.memory_space<smem>>
    %24 = vector.broadcast %23 : f32 to vector<2x128xf32>
    %25 = arith.addf %22, %24 : vector<2x128xf32>
    %c0_17 = arith.constant 0 : index
    %c0_18 = arith.constant 0 : index
    %c0_19 = arith.constant 0 : index
    %c0_20 = arith.constant 0 : index
    %26 = vector.load %arg5[%c0_17, %c0_18, %c0_19, %c0_20] : memref<1x4x2x128xf32, #tpu.memory_space<vmem>>, vector<1x1x2x128xf32>
    %27 = vector.shape_cast %26 : vector<1x1x2x128xf32> to vector<2x128xf32>
    %28 = arith.addf %25, %27 : vector<2x128xf32>
    %c0_21 = arith.constant 0 : index
    %c0_22 = arith.constant 0 : index
    %c0_23 = arith.constant 0 : index
    %c0_24 = arith.constant 0 : index
    %29 = vector.load %arg6[%c0_21, %c0_22, %c0_23, %c0_24] : memref<1x4x2x128xf32, #tpu.memory_space<vmem>>, vector<1x1x2x128xf32>
    %30 = vector.shape_cast %29 : vector<1x1x2x128xf32> to vector<2x128xf32>
    %31 = vector.shape_cast %28 : vector<2x128xf32> to vector<1x1x2x128xf32>
    tpu.vector_store %arg6[%c0_21, %c0_22, %c0_23, %c0_24], %31 {strides = array<i32>} : memref<1x4x2x128xf32, #tpu.memory_space<vmem>>, vector<1x1x2x128xf32>,
    %c4 = arith.constant 4 : index
    %32 = memref.load %arg2[%c4] : memref<16xf32, #tpu.memory_space<smem>>
    %c0_25 = arith.constant 0 : index
    %c0_26 = arith.constant 0 : index
    %c0_27 = arith.constant 0 : index
    %c0_28 = arith.constant 0 : index
    %33 = vector.load %arg4[%c0_25, %c0_26, %c0_27, %c0_28] : memref<1x4x2x128xf32, #tpu.memory_space<vmem>>, vector<1x1x2x128xf32>
    %34 = vector.shape_cast %33 : vector<1x1x2x128xf32> to vector<2x128xf32>
    %35 = vector.broadcast %32 : f32 to vector<2x128xf32>
    %36 = arith.mulf %35, %34 : vector<2x128xf32>
    %c5 = arith.constant 5 : index
    %37 = memref.load %arg2[%c5] : memref<16xf32, #tpu.memory_space<smem>>
    %c0_29 = arith.constant 0 : index
    %c1_30 = arith.constant 1 : index
    %c0_31 = arith.constant 0 : index
    %c0_32 = arith.constant 0 : index
    %38 = vector.load %arg4[%c0_29, %c1_30, %c0_31, %c0_32] : memref<1x4x2x128xf32, #tpu.memory_space<vmem>>, vector<1x1x2x128xf32>
    %39 = vector.shape_cast %38 : vector<1x1x2x128xf32> to vector<2x128xf32>
    %40 = vector.broadcast %37 : f32 to vector<2x128xf32>
    %41 = arith.mulf %40, %39 : vector<2x128xf32>
    %42 = arith.addf %36, %41 : vector<2x128xf32>
    %c6 = arith.constant 6 : index
    %43 = memref.load %arg2[%c6] : memref<16xf32, #tpu.memory_space<smem>>
    %c0_33 = arith.constant 0 : index
    %c2_34 = arith.constant 2 : index
    %c0_35 = arith.constant 0 : index
    %c0_36 = arith.constant 0 : index
    %44 = vector.load %arg4[%c0_33, %c2_34, %c0_35, %c0_36] : memref<1x4x2x128xf32, #tpu.memory_space<vmem>>, vector<1x1x2x128xf32>
    %45 = vector.shape_cast %44 : vector<1x1x2x128xf32> to vector<2x128xf32>
    %46 = vector.broadcast %43 : f32 to vector<2x128xf32>
    %47 = arith.mulf %46, %45 : vector<2x128xf32>
    %48 = arith.addf %42, %47 : vector<2x128xf32>
    %c7 = arith.constant 7 : index
    %49 = memref.load %arg2[%c7] : memref<16xf32, #tpu.memory_space<smem>>
    %c0_37 = arith.constant 0 : index
    %c3_38 = arith.constant 3 : index
    %c0_39 = arith.constant 0 : index
    %c0_40 = arith.constant 0 : index
    %50 = vector.load %arg4[%c0_37, %c3_38, %c0_39, %c0_40] : memref<1x4x2x128xf32, #tpu.memory_space<vmem>>, vector<1x1x2x128xf32>
    %51 = vector.shape_cast %50 : vector<1x1x2x128xf32> to vector<2x128xf32>
    %52 = vector.broadcast %49 : f32 to vector<2x128xf32>
    %53 = arith.mulf %52, %51 : vector<2x128xf32>
    %54 = arith.addf %48, %53 : vector<2x128xf32>
    %c1_41 = arith.constant 1 : index
    %55 = memref.load %arg3[%c1_41] : memref<4xf32, #tpu.memory_space<smem>>
    %56 = vector.broadcast %55 : f32 to vector<2x128xf32>
    %57 = arith.addf %54, %56 : vector<2x128xf32>
    %c0_42 = arith.constant 0 : index
    %c1_43 = arith.constant 1 : index
    %c0_44 = arith.constant 0 : index
    %c0_45 = arith.constant 0 : index
    %58 = vector.load %arg5[%c0_42, %c1_43, %c0_44, %c0_45] : memref<1x4x2x128xf32, #tpu.memory_space<vmem>>, vector<1x1x2x128xf32>
    %59 = vector.shape_cast %58 : vector<1x1x2x128xf32> to vector<2x128xf32>
    %60 = arith.addf %57, %59 : vector<2x128xf32>
    %c0_46 = arith.constant 0 : index
    %c1_47 = arith.constant 1 : index
    %c0_48 = arith.constant 0 : index
    %c0_49 = arith.constant 0 : index
    %61 = vector.load %arg6[%c0_46, %c1_47, %c0_48, %c0_49] : memref<1x4x2x128xf32, #tpu.memory_space<vmem>>, vector<1x1x2x128xf32>
    %62 = vector.shape_cast %61 : vector<1x1x2x128xf32> to vector<2x128xf32>
    %63 = vector.shape_cast %60 : vector<2x128xf32> to vector<1x1x2x128xf32>
    tpu.vector_store %arg6[%c0_46, %c1_47, %c0_48, %c0_49], %63 {strides = array<i32>} : memref<1x4x2x128xf32, #tpu.memory_space<vmem>>, vector<1x1x2x128xf32>,
    %c8 = arith.constant 8 : index
    %64 = memref.load %arg2[%c8] : memref<16xf32, #tpu.memory_space<smem>>
    %c0_50 = arith.constant 0 : index
    %c0_51 = arith.constant 0 : index
    %c0_52 = arith.constant 0 : index
    %c0_53 = arith.constant 0 : index
    %65 = vector.load %arg4[%c0_50, %c0_51, %c0_52, %c0_53] : memref<1x4x2x128xf32, #tpu.memory_space<vmem>>, vector<1x1x2x128xf32>
    %66 = vector.shape_cast %65 : vector<1x1x2x128xf32> to vector<2x128xf32>
    %67 = vector.broadcast %64 : f32 to vector<2x128xf32>
    %68 = arith.mulf %67, %66 : vector<2x128xf32>
    %c9 = arith.constant 9 : index
    %69 = memref.load %arg2[%c9] : memref<16xf32, #tpu.memory_space<smem>>
    %c0_54 = arith.constant 0 : index
    %c1_55 = arith.constant 1 : index
    %c0_56 = arith.constant 0 : index
    %c0_57 = arith.constant 0 : index
    %70 = vector.load %arg4[%c0_54, %c1_55, %c0_56, %c0_57] : memref<1x4x2x128xf32, #tpu.memory_space<vmem>>, vector<1x1x2x128xf32>
    %71 = vector.shape_cast %70 : vector<1x1x2x128xf32> to vector<2x128xf32>
    %72 = vector.broadcast %69 : f32 to vector<2x128xf32>
    %73 = arith.mulf %72, %71 : vector<2x128xf32>
    %74 = arith.addf %68, %73 : vector<2x128xf32>
    %c10 = arith.constant 10 : index
    %75 = memref.load %arg2[%c10] : memref<16xf32, #tpu.memory_space<smem>>
    %c0_58 = arith.constant 0 : index
    %c2_59 = arith.constant 2 : index
    %c0_60 = arith.constant 0 : index
    %c0_61 = arith.constant 0 : index
    %76 = vector.load %arg4[%c0_58, %c2_59, %c0_60, %c0_61] : memref<1x4x2x128xf32, #tpu.memory_space<vmem>>, vector<1x1x2x128xf32>
    %77 = vector.shape_cast %76 : vector<1x1x2x128xf32> to vector<2x128xf32>
    %78 = vector.broadcast %75 : f32 to vector<2x128xf32>
    %79 = arith.mulf %78, %77 : vector<2x128xf32>
    %80 = arith.addf %74, %79 : vector<2x128xf32>
    %c11 = arith.constant 11 : index
    %81 = memref.load %arg2[%c11] : memref<16xf32, #tpu.memory_space<smem>>
    %c0_62 = arith.constant 0 : index
    %c3_63 = arith.constant 3 : index
    %c0_64 = arith.constant 0 : index
    %c0_65 = arith.constant 0 : index
    %82 = vector.load %arg4[%c0_62, %c3_63, %c0_64, %c0_65] : memref<1x4x2x128xf32, #tpu.memory_space<vmem>>, vector<1x1x2x128xf32>
    %83 = vector.shape_cast %82 : vector<1x1x2x128xf32> to vector<2x128xf32>
    %84 = vector.broadcast %81 : f32 to vector<2x128xf32>
    %85 = arith.mulf %84, %83 : vector<2x128xf32>
    %86 = arith.addf %80, %85 : vector<2x128xf32>
    %c2_66 = arith.constant 2 : index
    %87 = memref.load %arg3[%c2_66] : memref<4xf32, #tpu.memory_space<smem>>
    %88 = vector.broadcast %87 : f32 to vector<2x128xf32>
    %89 = arith.addf %86, %88 : vector<2x128xf32>
    %c0_67 = arith.constant 0 : index
    %c2_68 = arith.constant 2 : index
    %c0_69 = arith.constant 0 : index
    %c0_70 = arith.constant 0 : index
    %90 = vector.load %arg5[%c0_67, %c2_68, %c0_69, %c0_70] : memref<1x4x2x128xf32, #tpu.memory_space<vmem>>, vector<1x1x2x128xf32>
    %91 = vector.shape_cast %90 : vector<1x1x2x128xf32> to vector<2x128xf32>
    %92 = arith.addf %89, %91 : vector<2x128xf32>
    %c0_71 = arith.constant 0 : index
    %c2_72 = arith.constant 2 : index
    %c0_73 = arith.constant 0 : index
    %c0_74 = arith.constant 0 : index
    %93 = vector.load %arg6[%c0_71, %c2_72, %c0_73, %c0_74] : memref<1x4x2x128xf32, #tpu.memory_space<vmem>>, vector<1x1x2x128xf32>
    %94 = vector.shape_cast %93 : vector<1x1x2x128xf32> to vector<2x128xf32>
    %95 = vector.shape_cast %92 : vector<2x128xf32> to vector<1x1x2x128xf32>
    tpu.vector_store %arg6[%c0_71, %c2_72, %c0_73, %c0_74], %95 {strides = array<i32>} : memref<1x4x2x128xf32, #tpu.memory_space<vmem>>, vector<1x1x2x128xf32>,
    %c12 = arith.constant 12 : index
    %96 = memref.load %arg2[%c12] : memref<16xf32, #tpu.memory_space<smem>>
    %c0_75 = arith.constant 0 : index
    %c0_76 = arith.constant 0 : index
    %c0_77 = arith.constant 0 : index
    %c0_78 = arith.constant 0 : index
    %97 = vector.load %arg4[%c0_75, %c0_76, %c0_77, %c0_78] : memref<1x4x2x128xf32, #tpu.memory_space<vmem>>, vector<1x1x2x128xf32>
    %98 = vector.shape_cast %97 : vector<1x1x2x128xf32> to vector<2x128xf32>
    %99 = vector.broadcast %96 : f32 to vector<2x128xf32>
    %100 = arith.mulf %99, %98 : vector<2x128xf32>
    %c13 = arith.constant 13 : index
    %101 = memref.load %arg2[%c13] : memref<16xf32, #tpu.memory_space<smem>>
    %c0_79 = arith.constant 0 : index
    %c1_80 = arith.constant 1 : index
    %c0_81 = arith.constant 0 : index
    %c0_82 = arith.constant 0 : index
    %102 = vector.load %arg4[%c0_79, %c1_80, %c0_81, %c0_82] : memref<1x4x2x128xf32, #tpu.memory_space<vmem>>, vector<1x1x2x128xf32>
    %103 = vector.shape_cast %102 : vector<1x1x2x128xf32> to vector<2x128xf32>
    %104 = vector.broadcast %101 : f32 to vector<2x128xf32>
    %105 = arith.mulf %104, %103 : vector<2x128xf32>
    %106 = arith.addf %100, %105 : vector<2x128xf32>
    %c14 = arith.constant 14 : index
    %107 = memref.load %arg2[%c14] : memref<16xf32, #tpu.memory_space<smem>>
    %c0_83 = arith.constant 0 : index
    %c2_84 = arith.constant 2 : index
    %c0_85 = arith.constant 0 : index
    %c0_86 = arith.constant 0 : index
    %108 = vector.load %arg4[%c0_83, %c2_84, %c0_85, %c0_86] : memref<1x4x2x128xf32, #tpu.memory_space<vmem>>, vector<1x1x2x128xf32>
    %109 = vector.shape_cast %108 : vector<1x1x2x128xf32> to vector<2x128xf32>
    %110 = vector.broadcast %107 : f32 to vector<2x128xf32>
    %111 = arith.mulf %110, %109 : vector<2x128xf32>
    %112 = arith.addf %106, %111 : vector<2x128xf32>
    %c15 = arith.constant 15 : index
    %113 = memref.load %arg2[%c15] : memref<16xf32, #tpu.memory_space<smem>>
    %c0_87 = arith.constant 0 : index
    %c3_88 = arith.constant 3 : index
    %c0_89 = arith.constant 0 : index
    %c0_90 = arith.constant 0 : index
    %114 = vector.load %arg4[%c0_87, %c3_88, %c0_89, %c0_90] : memref<1x4x2x128xf32, #tpu.memory_space<vmem>>, vector<1x1x2x128xf32>
    %115 = vector.shape_cast %114 : vector<1x1x2x128xf32> to vector<2x128xf32>
    %116 = vector.broadcast %113 : f32 to vector<2x128xf32>
    %117 = arith.mulf %116, %115 : vector<2x128xf32>
    %118 = arith.addf %112, %117 : vector<2x128xf32>
    %c3_91 = arith.constant 3 : index
    %119 = memref.load %arg3[%c3_91] : memref<4xf32, #tpu.memory_space<smem>>
    %120 = vector.broadcast %119 : f32 to vector<2x128xf32>
    %121 = arith.addf %118, %120 : vector<2x128xf32>
    %c0_92 = arith.constant 0 : index
    %c3_93 = arith.constant 3 : index
    %c0_94 = arith.constant 0 : index
    %c0_95 = arith.constant 0 : index
    %122 = vector.load %arg5[%c0_92, %c3_93, %c0_94, %c0_95] : memref<1x4x2x128xf32, #tpu.memory_space<vmem>>, vector<1x1x2x128xf32>
    %123 = vector.shape_cast %122 : vector<1x1x2x128xf32> to vector<2x128xf32>
    %124 = arith.addf %121, %123 : vector<2x128xf32>
    %c0_96 = arith.constant 0 : index
    %c3_97 = arith.constant 3 : index
    %c0_98 = arith.constant 0 : index
    %c0_99 = arith.constant 0 : index
    %125 = vector.load %arg6[%c0_96, %c3_97, %c0_98, %c0_99] : memref<1x4x2x128xf32, #tpu.memory_space<vmem>>, vector<1x1x2x128xf32>
    %126 = vector.shape_cast %125 : vector<1x1x2x128xf32> to vector<2x128xf32>
    %127 = vector.shape_cast %124 : vector<2x128xf32> to vector<1x1x2x128xf32>
    tpu.vector_store %arg6[%c0_96, %c3_97, %c0_98, %c0_99], %127 {strides = array<i32>} : memref<1x4x2x128xf32, #tpu.memory_space<vmem>>, vector<1x1x2x128xf32>,
    return
  }
  func.func @transform_0(%arg0: i32, %arg1: i32) -> i32 {
    %c0_i32 = arith.constant 0 : i32
    %c0_i32_0 = arith.constant 0 : i32
    return %c0_i32 : i32
  }
  func.func @transform_1(%arg0: i32, %arg1: i32) -> i32 {
    %c0_i32 = arith.constant 0 : i32
    %c0_i32_0 = arith.constant 0 : i32
    return %c0_i32 : i32
  }
  func.func @transform_2(%arg0: i32, %arg1: i32) -> (i32, i32, i32, i32) {
    %c0_i32 = arith.constant 0 : i32
    %c0_i32_0 = arith.constant 0 : i32
    %c0_i32_1 = arith.constant 0 : i32
    return %arg0, %c0_i32, %arg1, %c0_i32_0 : i32, i32, i32, i32
  }
  func.func @transform_3(%arg0: i32, %arg1: i32) -> (i32, i32, i32, i32) {
    %c0_i32 = arith.constant 0 : i32
    %c0_i32_0 = arith.constant 0 : i32
    %c0_i32_1 = arith.constant 0 : i32
    return %arg0, %c0_i32, %arg1, %c0_i32_0 : i32, i32, i32, i32
  }
  func.func @transform_4(%arg0: i32, %arg1: i32) -> (i32, i32, i32, i32) {
    %c0_i32 = arith.constant 0 : i32
    %c0_i32_0 = arith.constant 0 : i32
    %c0_i32_1 = arith.constant 0 : i32
    return %arg0, %c0_i32, %arg1, %c0_i32_0 : i32, i32, i32, i32
  }
}

</mosaic_0001>

<llo_original>
// kernel: tpu_custom_call.1
$region0: #{tpu_custom_call.1}
  #allocation0 [shape = 'u32[]', space=smem, size = 0x4, offset = 0x4, fixed_abs, tag = 'smem constant byte address 0x4 - core index']
  #allocation1 [shape = 'u32[144,128]{1,0:T(1,128)}', space=vmem, size = 0x12000, scoped, tag = 'internal scratch']
  %s0 = inlined_call_operand.hbm [shape: f32[16], index: 0, kind: input, shape index: {}]
  %s1 = inlined_call_operand.vmem [shape: f32[4], index: 1, kind: input, shape index: {}]
  %s2 = inlined_call_operand.hbm [shape: f32[2,4,2,128], index: 2, kind: input, shape index: {}]
  %s3 = inlined_call_operand.hbm [shape: f32[2,4,2,128], index: 3, kind: input, shape index: {}]
  %s4 = inlined_call_operand.hbm [shape: f32[2,4,2,128], index: 4, kind: output, shape index: {}]
  %s5 = sld [smem:[#allocation0]]
  $region65: #{tpu_custom_call.1} parent=0
    _
  %s7 = ssub.s32 1, %s5
  %s8 = scalar_select 0, %s7, %s5
  $region1: #{tpu_custom_call.1} parent=0
    #allocation2 [shape = 'u8[512]{0}', space=smem, size = 0x200, scoped, tag = 'input window, operand 0, single buffered']
    #allocation3 [shape = 's32[2]{0}', space=sflag, size = 0x8, scoped, tag = 'scoped memory for tpu_custom_call.1']
    #allocation4 [shape = 's32[2]{0}', space=sflag, size = 0x8, scoped, tag = 'scoped memory for tpu_custom_call.1']
    #allocation5 [shape = 's32[2]{0}', space=sflag, size = 0x8, scoped, tag = 'scoped memory for tpu_custom_call.1']
    #allocation6 [shape = 's32[2]{0}', space=sflag, size = 0x8, scoped, tag = 'scoped memory for tpu_custom_call.1']
    #allocation7 [shape = 'u8[512]{0}', space=smem, size = 0x200, scoped, tag = 'input window, operand 1, single buffered']
    #allocation8 [shape = 'u8[8192]{0}', space=vmem, size = 0x2000, scoped, tag = 'input window, operand 2']
    #allocation9 [shape = 'u8[8192]{0}', space=vmem, size = 0x2000, scoped, tag = 'input window, operand 3']
    #allocation10 [shape = 's32[2]{0}', space=sflag, size = 0x8, scoped, tag = 'scoped memory for tpu_custom_call.1']
    #allocation11 [shape = 'u8[8192]{0}', space=vmem, size = 0x2000, scoped, tag = 'output window, operand 0']
    %9 = vsyncpa [#allocation5], 0
    %10 = vsyncpa [#allocation6], 0
    %11 = vsyncpa [#allocation3], 0
    %s12 = scalar_lea.sflag [#allocation3], 1
    %13 = vsyncpa %s12, 0
    %14 = vsyncpa [#allocation10], 0
    %s15 = scalar_lea.sflag [#allocation10], 1
    %16 = vsyncpa %s15, 0
    %17 = vsyncpa [#allocation4], 0
    %s18 = scalar_lea.sflag [#allocation4], 1
    %19 = vsyncpa %s18, 0
    loop: start=0, step=1, limit=4
    $region2: #{tpu_custom_call.1} parent=1 // loop_pre_header
      _
    $region3: #{tpu_custom_call.1} parent=1 // loop_header
      %s21 = sphi 0, %s25
      %p22 = scmp.ge.s32.totalorder %s21, 4
      %s28 = sphi 0, %s40
      %s29 = sphi 0, %s36
      %s30 = sphi 0, %s28
      %s31 = sphi 0, %s29
      %s32 = sphi 0, %s30
      %s33 = sphi 0, %s31
      %s41 = sphi 0, %s41
      %s43 = sphi 0, %s41
      %s44 = sphi 0, %s43
      %s58 = sphi 0, %s44
      %s62 = sphi 0, %s62
      %s64 = sphi 0, %s62
      %s65 = sphi 0, %s64
      %s79 = sphi 0, %s65
      %s87 = sphi 0, %s89
      %s90 = sphi 0, %s87
      %s91 = sphi 0, %s90
      %s107 = sphi 0, %s91
      %s115 = sphi 0, %s117
      %s118 = sphi 0, %s115
      %s119 = sphi 0, %s118
      %s135 = sphi 0, %s119
      %s143 = sphi 0, %s145
      %s146 = sphi 0, %s143
      %s147 = sphi 0, %s146
      %s163 = sphi 0, %s147
    $region4: #{tpu_custom_call.1} parent=1 // loop_header_branch
      %24 = sbr.rel (%p22) target = $region8
    $region5: #{tpu_custom_call.1} parent=1 // loop_body
      %s26 = ssub.s32 %s21, 1
      %s27 = ssub.s32 %s21, 2
      %s34 = sadd.s32 1, %s29
      %p35 = scmp.ge.s32.totalorder %s34, 1
      %s36 = scalar_select %p35, 0, %s34
      %s37 = sadd.s32 1, %s28
      %s38 = scalar_select %p35, %s37, %s28
      %p39 = scmp.ge.s32.totalorder %s38, 2
      %s40 = scalar_select %p39, 0, %s38
      %s42 = sadd.s32 %s41, 1
      %p45 = scmp.eq.s32.totalorder %s21, 1
      %p46 = scmp.ne.s32.totalorder %s41, %s43
      %p47 = scmp.eq.s32.totalorder %s21, 0
      %p48 = por %p46, %p47
      %p49 = scmp.ne.s32.totalorder %s41, %s43
      %p50 = scmp.eq.s32.totalorder %s26, 1
      %p51 = por %p49, %p50
      %p52 = scmp.ne.s32.totalorder %s43, %s44
      %p53 = scmp.eq.s32.totalorder %s26, 0
      %p54 = por %p52, %p53
      %p55 = scmp.ne.s32.totalorder %s43, %s44
      %p56 = scmp.eq.s32.totalorder %s27, 1
      %p57 = por %p55, %p56
      %p59 = scmp.ne.s32.totalorder %s44, %s58
      %p60 = scmp.eq.s32.totalorder %s27, 0
      %p61 = por %p59, %p60
      %s63 = sadd.s32 %s62, 1
      %p66 = scmp.eq.s32.totalorder %s21, 1
      %p67 = scmp.ne.s32.totalorder %s62, %s64
      %p68 = scmp.eq.s32.totalorder %s21, 0
      %p69 = por %p67, %p68
      %p70 = scmp.ne.s32.totalorder %s62, %s64
      %p71 = scmp.eq.s32.totalorder %s26, 1
      %p72 = por %p70, %p71
      %p73 = scmp.ne.s32.totalorder %s64, %s65
      %p74 = scmp.eq.s32.totalorder %s26, 0
      %p75 = por %p73, %p74
      %p76 = scmp.ne.s32.totalorder %s64, %s65
      %p77 = scmp.eq.s32.totalorder %s27, 1
      %p78 = por %p76, %p77
      %p80 = scmp.ne.s32.totalorder %s65, %s79
      %p81 = scmp.eq.s32.totalorder %s27, 0
      %p82 = por %p80, %p81
      %s83 = ssub.s32 %s28, %s40
      %s84 = ssub.s32 %s29, %s36
      %s85 = sor.u32 %s83, %s84
      %p86 = scmp.eq.s32.totalorder %s85, 0
      %s88 = sadd.s32 %s87, 1
      %s89 = scalar_select %p86, %s87, %s88
      %p92 = pneg %p86
      %p93 = scmp.eq.s32.totalorder %s21, 1
      %p94 = por %p92, %p93
      %p95 = scmp.ne.s32.totalorder %s87, %s90
      %p96 = scmp.eq.s32.totalorder %s21, 0
      %p97 = por %p95, %p96
      %p98 = scmp.ne.s32.totalorder %s87, %s90
      %p99 = scmp.eq.s32.totalorder %s26, 1
      %p100 = por %p98, %p99
      %p101 = scmp.ne.s32.totalorder %s90, %s91
      %p102 = scmp.eq.s32.totalorder %s26, 0
      %p103 = por %p101, %p102
      %p104 = scmp.ne.s32.totalorder %s90, %s91
      %p105 = scmp.eq.s32.totalorder %s27, 1
      %p106 = por %p104, %p105
      %p108 = scmp.ne.s32.totalorder %s91, %s107
      %p109 = scmp.eq.s32.totalorder %s27, 0
      %p110 = por %p108, %p109
      %s111 = ssub.s32 %s28, %s40
      %s112 = ssub.s32 %s29, %s36
      %s113 = sor.u32 %s111, %s112
      %p114 = scmp.eq.s32.totalorder %s113, 0
      %s116 = sadd.s32 %s115, 1
      %s117 = scalar_select %p114, %s115, %s116
      %p120 = pneg %p114
      %p121 = scmp.eq.s32.totalorder %s21, 1
      %p122 = por %p120, %p121
      %p123 = scmp.ne.s32.totalorder %s115, %s118
      %p124 = scmp.eq.s32.totalorder %s21, 0
      %p125 = por %p123, %p124
      %p126 = scmp.ne.s32.totalorder %s115, %s118
      %p127 = scmp.eq.s32.totalorder %s26, 1
      %p128 = por %p126, %p127
      %p129 = scmp.ne.s32.totalorder %s118, %s119
      %p130 = scmp.eq.s32.totalorder %s26, 0
      %p131 = por %p129, %p130
      %p132 = scmp.ne.s32.totalorder %s118, %s119
      %p133 = scmp.eq.s32.totalorder %s27, 1
      %p134 = por %p132, %p133
      %p136 = scmp.ne.s32.totalorder %s119, %s135
      %p137 = scmp.eq.s32.totalorder %s27, 0
      %p138 = por %p136, %p137
      %s139 = ssub.s32 %s28, %s40
      %s140 = ssub.s32 %s29, %s36
      %s141 = sor.u32 %s139, %s140
      %p142 = scmp.eq.s32.totalorder %s141, 0
      %s144 = sadd.s32 %s143, 1
      %s145 = scalar_select %p142, %s143, %s144
      %p148 = pneg %p142
      %p149 = scmp.eq.s32.totalorder %s21, 1
      %p150 = por %p148, %p149
      %p151 = scmp.ne.s32.totalorder %s143, %s146
      %p152 = scmp.eq.s32.totalorder %s21, 0
      %p153 = por %p151, %p152
      %p154 = scmp.ne.s32.totalorder %s143, %s146
      %p155 = scmp.eq.s32.totalorder %s26, 1
      %p156 = por %p154, %p155
      %p157 = scmp.ne.s32.totalorder %s146, %s147
      %p158 = scmp.eq.s32.totalorder %s26, 0
      %p159 = por %p157, %p158
      %p160 = scmp.ne.s32.totalorder %s146, %s147
      %p161 = scmp.eq.s32.totalorder %s27, 1
      %p162 = por %p160, %p161
      %p164 = scmp.ne.s32.totalorder %s147, %s163
      %p165 = scmp.eq.s32.totalorder %s27, 0
      %p166 = por %p164, %p165
      %p167 = scmp.le.s32.totalorder 1, %s21
      %p168 = scmp.lt.s32.totalorder %s21, 3
      %p169 = pnand %p167, %p168
      %p170 = pneg %p169
      // Predicated region
      $region9: #{tpu_custom_call.1} parent=5 // pred_check
        _
      $region10: #{tpu_custom_call.1} parent=5 // pred_check_branch
        %172 = sbr.rel (%p169) target = $region12
      $region11: #{tpu_custom_call.1} parent=5 // pred_region
        %s173 = ssub.s32 %s21, 1
        // Predicated region
        $region13: #{tpu_custom_call.1} parent=11 // pred_check
          %p174 = pneg %p54
        $region14: #{tpu_custom_call.1} parent=11 // pred_check_branch
          %176 = sbr.rel (%p174) target = $region16
        $region15: #{tpu_custom_call.1} parent=11 // pred_region
          %s178 = ssub.s32 16, 16
          %179 = vsyncadd [#allocation5], %s178
          %182 = dma.hbm_to_smem %s0, 16, [#allocation2], [#allocation5]
        $region16: #{tpu_custom_call.1} parent=11 // pred_fallthru
          _
        // Predicated region
        $region17: #{tpu_custom_call.1} parent=11 // pred_check
          %p183 = pneg %p75
        $region18: #{tpu_custom_call.1} parent=11 // pred_check_branch
          %185 = sbr.rel (%p183) target = $region20
        $region19: #{tpu_custom_call.1} parent=11 // pred_region
          %s187 = ssub.s32 16, 16
          %188 = vsyncadd [#allocation6], %s187
          %s190 = sshll.u32 %s1, 4
          %s191 = int_to_ptr.vmem [resolvable:$true] %s190
          %193 = dma.vmem_to_smem %s191, 16, [#allocation7], [#allocation6]
        $region20: #{tpu_custom_call.1} parent=11 // pred_fallthru
          _
      $region12: #{tpu_custom_call.1} parent=5 // pred_fallthru
        _
      %p194 = scmp.lt.s32.totalorder %s21, 2
      // Predicated region
      $region21: #{tpu_custom_call.1} parent=5 // pred_check
        %p195 = pneg %p194
      $region22: #{tpu_custom_call.1} parent=5 // pred_check_branch
        %197 = sbr.rel (%p195) target = $region24
      $region23: #{tpu_custom_call.1} parent=5 // pred_region
        // Predicated region
        $region25: #{tpu_custom_call.1} parent=23 // pred_check
          %p198 = pneg %p97
        $region26: #{tpu_custom_call.1} parent=23 // pred_check_branch
          %200 = sbr.rel (%p198) target = $region28
        $region27: #{tpu_custom_call.1} parent=23 // pred_region
          %s201 = sand.u32 %s87, 1
          %s202 = scalar_lea.sflag [#allocation3], %s201
          %s203 = sand.u32 %s87, 1
          %s204 = smul.addr %s203, 8
          %s205 = scalar_lea.vmem [#allocation8], %s204
          %s207 = ssub.s32 128, 128
          %208 = vsyncadd %s202, %s207
          %s209 = smul.addr %s28, 4
          %s210 = sadd.s32 %s29, %s209
          %s211 = smul.addr %s210, 32
          %s212 = scalar_lea.hbm %s2, %s211
          %s213 = sshll.u32 %s205, 4
          %s214 = int_to_ptr.vmem [resolvable:$true] %s213
          %219 = dma.hbm_to_vmem [thread:$0]  %s212, 128, %s214, %s202, 32, 32, 2
        $region28: #{tpu_custom_call.1} parent=23 // pred_fallthru
          _
        // Predicated region
        $region29: #{tpu_custom_call.1} parent=23 // pred_check
          %p220 = pneg %p125
        $region30: #{tpu_custom_call.1} parent=23 // pred_check_branch
          %222 = sbr.rel (%p220) target = $region32
        $region31: #{tpu_custom_call.1} parent=23 // pred_region
          %s223 = sand.u32 %s115, 1
          %s224 = scalar_lea.sflag [#allocation10], %s223
          %s225 = sand.u32 %s115, 1
          %s226 = smul.addr %s225, 8
          %s227 = scalar_lea.vmem [#allocation9], %s226
          %s229 = ssub.s32 128, 128
          %230 = vsyncadd %s224, %s229
          %s231 = smul.addr %s28, 4
          %s232 = sadd.s32 %s29, %s231
          %s233 = smul.addr %s232, 32
          %s234 = scalar_lea.hbm %s3, %s233
          %s235 = sshll.u32 %s227, 4
          %s236 = int_to_ptr.vmem [resolvable:$true] %s235
          %241 = dma.hbm_to_vmem [thread:$0]  %s234, 128, %s236, %s224, 32, 32, 2
        $region32: #{tpu_custom_call.1} parent=23 // pred_fallthru
          _
      $region24: #{tpu_custom_call.1} parent=5 // pred_fallthru
        _
      %p242 = scmp.le.s32.totalorder 1, %s21
      %p243 = scmp.lt.s32.totalorder %s21, 3
      %p244 = pnand %p242, %p243
      %p245 = pneg %p244
      // Predicated region
      $region33: #{tpu_custom_call.1} parent=5 // pred_check
        _
      $region34: #{tpu_custom_call.1} parent=5 // pred_check_branch
        %247 = sbr.rel (%p244) target = $region36
      $region35: #{tpu_custom_call.1} parent=5 // pred_region
        %s248 = ssub.s32 %s21, 1
        // Predicated region
        $region37: #{tpu_custom_call.1} parent=35 // pred_check
          %p249 = pneg %p54
        $region38: #{tpu_custom_call.1} parent=35 // pred_check_branch
          %251 = sbr.rel (%p249) target = $region40
        $region39: #{tpu_custom_call.1} parent=35 // pred_region
          %252 = dma.done [#allocation5], 16
        $region40: #{tpu_custom_call.1} parent=35 // pred_fallthru
          _
        // Predicated region
        $region41: #{tpu_custom_call.1} parent=35 // pred_check
          %p253 = pneg %p75
        $region42: #{tpu_custom_call.1} parent=35 // pred_check_branch
          %255 = sbr.rel (%p253) target = $region44
        $region43: #{tpu_custom_call.1} parent=35 // pred_region
          %256 = dma.done [#allocation6], 16
        $region44: #{tpu_custom_call.1} parent=35 // pred_fallthru
          _
        %s257 = sand.u32 %s90, 1
        %s258 = scalar_lea.sflag [#allocation3], %s257
        %s259 = sand.u32 %s90, 1
        %s260 = smul.addr %s259, 8
        %s261 = scalar_lea.vmem [#allocation8], %s260
        // Predicated region
        $region45: #{tpu_custom_call.1} parent=35 // pred_check
          %p262 = pneg %p103
        $region46: #{tpu_custom_call.1} parent=35 // pred_check_branch
          %264 = sbr.rel (%p262) target = $region48
        $region47: #{tpu_custom_call.1} parent=35 // pred_region
          %265 = dma.done %s258, 128
        $region48: #{tpu_custom_call.1} parent=35 // pred_fallthru
          _
        %s266 = sand.u32 %s118, 1
        %s267 = scalar_lea.sflag [#allocation10], %s266
        %s268 = sand.u32 %s118, 1
        %s269 = smul.addr %s268, 8
        %s270 = scalar_lea.vmem [#allocation9], %s269
        // Predicated region
        $region49: #{tpu_custom_call.1} parent=35 // pred_check
          %p271 = pneg %p131
        $region50: #{tpu_custom_call.1} parent=35 // pred_check_branch
          %273 = sbr.rel (%p271) target = $region52
        $region51: #{tpu_custom_call.1} parent=35 // pred_region
          %274 = dma.done %s267, 128
        $region52: #{tpu_custom_call.1} parent=35 // pred_fallthru
          _
        %275 = sfence
        %p276 = pneg %p54
        %p277 = pneg %p51
        %p278 = pneg %p75
        %p279 = pneg %p72
        %s280 = sand.u32 %s90, 1
        %s281 = scalar_lea.sflag [#allocation3], %s280
        %s282 = sand.u32 %s90, 1
        %s283 = smul.addr %s282, 8
        %s284 = scalar_lea.vmem [#allocation8], %s283
        %p285 = pneg %p103
        %p286 = pneg %p100
        %s287 = sand.u32 %s118, 1
        %s288 = scalar_lea.sflag [#allocation10], %s287
        %s289 = sand.u32 %s118, 1
        %s290 = smul.addr %s289, 8
        %s291 = scalar_lea.vmem [#allocation9], %s290
        %p292 = pneg %p131
        %p293 = pneg %p128
        %p294 = pneg %p159
        %p295 = pneg %p156
        %s296 = sand.u32 %s146, 1
        %s297 = scalar_lea.sflag [#allocation4], %s296
        %s298 = sand.u32 %s146, 1
        %s299 = smul.addr %s298, 8
        %s300 = scalar_lea.vmem [#allocation11], %s299
        %s301 = sld [smem:[#allocation2]]
        %v302 = vld [vmem:[%s261] sm:$0x3]
        %v303 = vstv %s301
        %v304 = vmul.f32 %v303, %v302
        %s305 = sld [smem:[#allocation2 + $0x1]]
        %s306 = scalar_lea.vmem %s261, 2 [#allocation8]
        %v307 = vld [vmem:[%s306] sm:$0x3]
        %v308 = vstv %s305
        %v309 = vmul.f32 %v308, %v307
        %v310 = vadd.f32 %v304, %v309
        %s311 = sld [smem:[#allocation2 + $0x2]]
        %s312 = scalar_lea.vmem %s261, 4 [#allocation8]
        %v313 = vld [vmem:[%s312] sm:$0x3]
        %v314 = vstv %s311
        %v315 = vmul.f32 %v314, %v313
        %v316 = vadd.f32 %v310, %v315
        %s317 = sld [smem:[#allocation2 + $0x3]]
        %s318 = scalar_lea.vmem %s261, 6 [#allocation8]
        %v319 = vld [vmem:[%s318] sm:$0x3]
        %v320 = vstv %s317
        %v321 = vmul.f32 %v320, %v319
        %v322 = vadd.f32 %v316, %v321
        %s323 = sld [smem:[#allocation7]]
        %v324 = vstv %s323
        %v325 = vadd.f32 %v322, %v324
        %v326 = vld [vmem:[%s270] sm:$0x3]
        %v327 = vadd.f32 %v325, %v326
        %328 = vst [vmem:[%s300] sm:$0x3] %v327
        %s329 = sld [smem:[#allocation2 + $0x4]]
        %v330 = vld [vmem:[%s261] sm:$0x3]
        %v331 = vstv %s329
        %v332 = vmul.f32 %v331, %v330
        %s333 = sld [smem:[#allocation2 + $0x5]]
        %v334 = vld [vmem:[%s306] sm:$0x3]
        %v335 = vstv %s333
        %v336 = vmul.f32 %v335, %v334
        %v337 = vadd.f32 %v332, %v336
        %s338 = sld [smem:[#allocation2 + $0x6]]
        %v339 = vld [vmem:[%s312] sm:$0x3]
        %v340 = vstv %s338
        %v341 = vmul.f32 %v340, %v339
        %v342 = vadd.f32 %v337, %v341
        %s343 = sld [smem:[#allocation2 + $0x7]]
        %v344 = vld [vmem:[%s318] sm:$0x3]
        %v345 = vstv %s343
        %v346 = vmul.f32 %v345, %v344
        %v347 = vadd.f32 %v342, %v346
        %s348 = sld [smem:[#allocation7 + $0x1]]
        %v349 = vstv %s348
        %v350 = vadd.f32 %v347, %v349
        %s351 = scalar_lea.vmem %s270, 2 [#allocation9]
        %v352 = vld [vmem:[%s351] sm:$0x3]
        %v353 = vadd.f32 %v350, %v352
        %s354 = scalar_lea.vmem %s300, 2 [#allocation11]
        %355 = vst [vmem:[%s354] sm:$0x3] %v353
        %s356 = sld [smem:[#allocation2 + $0x8]]
        %v357 = vld [vmem:[%s261] sm:$0x3]
        %v358 = vstv %s356
        %v359 = vmul.f32 %v358, %v357
        %s360 = sld [smem:[#allocation2 + $0x9]]
        %v361 = vld [vmem:[%s306] sm:$0x3]
        %v362 = vstv %s360
        %v363 = vmul.f32 %v362, %v361
        %v364 = vadd.f32 %v359, %v363
        %s365 = sld [smem:[#allocation2 + $0xa]]
        %v366 = vld [vmem:[%s312] sm:$0x3]
        %v367 = vstv %s365
        %v368 = vmul.f32 %v367, %v366
        %v369 = vadd.f32 %v364, %v368
        %s370 = sld [smem:[#allocation2 + $0xb]]
        %v371 = vld [vmem:[%s318] sm:$0x3]
        %v372 = vstv %s370
        %v373 = vmul.f32 %v372, %v371
        %v374 = vadd.f32 %v369, %v373
        %s375 = sld [smem:[#allocation7 + $0x2]]
        %v376 = vstv %s375
        %v377 = vadd.f32 %v374, %v376
        %s378 = scalar_lea.vmem %s270, 4 [#allocation9]
        %v379 = vld [vmem:[%s378] sm:$0x3]
        %v380 = vadd.f32 %v377, %v379
        %s381 = scalar_lea.vmem %s300, 4 [#allocation11]
        %382 = vst [vmem:[%s381] sm:$0x3] %v380
        %s383 = sld [smem:[#allocation2 + $0xc]]
        %v384 = vld [vmem:[%s261] sm:$0x3]
        %v385 = vstv %s383
        %v386 = vmul.f32 %v385, %v384
        %s387 = sld [smem:[#allocation2 + $0xd]]
        %v388 = vld [vmem:[%s306] sm:$0x3]
        %v389 = vstv %s387
        %v390 = vmul.f32 %v389, %v388
        %v391 = vadd.f32 %v386, %v390
        %s392 = sld [smem:[#allocation2 + $0xe]]
        %v393 = vld [vmem:[%s312] sm:$0x3]
        %v394 = vstv %s392
        %v395 = vmul.f32 %v394, %v393
        %v396 = vadd.f32 %v391, %v395
        %s397 = sld [smem:[#allocation2 + $0xf]]
        %v398 = vld [vmem:[%s318] sm:$0x3]
        %v399 = vstv %s397
        %v400 = vmul.f32 %v399, %v398
        %v401 = vadd.f32 %v396, %v400
        %s402 = sld [smem:[#allocation7 + $0x3]]
        %v403 = vstv %s402
        %v404 = vadd.f32 %v401, %v403
        %s405 = scalar_lea.vmem %s270, 6 [#allocation9]
        %v406 = vld [vmem:[%s405] sm:$0x3]
        %v407 = vadd.f32 %v404, %v406
        %s408 = scalar_lea.vmem %s300, 6 [#allocation11]
        %409 = vst [vmem:[%s408] sm:$0x3] %v407
        %s410 = sand.u32 %s146, 1
        %s411 = scalar_lea.sflag [#allocation4], %s410
        %s412 = sand.u32 %s146, 1
        %s413 = smul.addr %s412, 8
        %s414 = scalar_lea.vmem [#allocation11], %s413
        // Predicated region
        $region53: #{tpu_custom_call.1} parent=35 // pred_check
          %p415 = pneg %p156
        $region54: #{tpu_custom_call.1} parent=35 // pred_check_branch
          %417 = sbr.rel (%p415) target = $region56
        $region55: #{tpu_custom_call.1} parent=35 // pred_region
          %s419 = ssub.s32 128, 128
          %420 = vsyncadd %s411, %s419
          %s421 = smul.addr %s30, 4
          %s422 = sadd.s32 %s31, %s421
          %s423 = smul.addr %s422, 32
          %s424 = scalar_lea.hbm %s4, %s423
          %s425 = sshll.u32 %s414, 4
          %s426 = int_to_ptr.vmem [resolvable:$true] %s425
          %431 = dma.vmem_to_hbm [thread:$0]  %s426, 128, %s424, %s411, 32, 32, 2
        $region56: #{tpu_custom_call.1} parent=35 // pred_fallthru
          _
      $region36: #{tpu_custom_call.1} parent=5 // pred_fallthru
        _
      %p432 = scmp.le.s32.totalorder 2, %s21
      // Predicated region
      $region57: #{tpu_custom_call.1} parent=5 // pred_check
        %p433 = pneg %p432
      $region58: #{tpu_custom_call.1} parent=5 // pred_check_branch
        %435 = sbr.rel (%p433) target = $region60
      $region59: #{tpu_custom_call.1} parent=5 // pred_region
        %s436 = ssub.s32 %s21, 2
        // Predicated region
        $region61: #{tpu_custom_call.1} parent=59 // pred_check
          %p437 = pneg %p162
        $region62: #{tpu_custom_call.1} parent=59 // pred_check_branch
          %439 = sbr.rel (%p437) target = $region64
        $region63: #{tpu_custom_call.1} parent=59 // pred_region
          %s440 = sand.u32 %s147, 1
          %s441 = scalar_lea.sflag [#allocation4], %s440
          %s442 = sand.u32 %s147, 1
          %s443 = smul.addr %s442, 8
          %s444 = scalar_lea.vmem [#allocation11], %s443
          %445 = dma.done %s441, 128
        $region64: #{tpu_custom_call.1} parent=59 // pred_fallthru
          _
      $region60: #{tpu_custom_call.1} parent=5 // pred_fallthru
        _
    $region6: #{tpu_custom_call.1} parent=1 // loop_footer
      %s25 = sadd.s32 1, %s21
    $region7: #{tpu_custom_call.1} parent=1 // loop_footer_branch
      %20 = sbr.rel target = $region3
    $region8: #{tpu_custom_call.1} parent=1 // loop_exit
      _
    %446 = vsyncpa [#allocation3], 1
    %s447 = scalar_lea.sflag [#allocation3], 1
    %448 = vsyncpa %s447, 1
    %449 = vsyncpa [#allocation10], 1
    %s450 = scalar_lea.sflag [#allocation10], 1
    %451 = vsyncpa %s450, 1
    %452 = vsyncpa [#allocation4], 1
    %s453 = scalar_lea.sflag [#allocation4], 1
    %454 = vsyncpa %s453, 1
    %455 = vsyncpa [#allocation5], 1
    %s456 = scalar_lea.sflag [#allocation5], 1
    %457 = vsyncpa %s456, 1
    %458 = vsyncpa [#allocation6], 1
    %s459 = scalar_lea.sflag [#allocation6], 1
    %460 = vsyncpa %s459, 1

</llo_original>
